<compile_context>
chip_gen: v5e
topology: v5e:2x2
jax: 0.10.0
libtpu: 0.0.40
codegen_flags: <defaults>
</compile_context>

<pallas_src>
import jax
import jax.numpy as jnp
from jax import lax
from jax.experimental import pallas as pl
from jax.experimental.pallas import tpu as pltpu


def _round_up(x, m):
    return (x + m - 1) // m * m


def _make_lstm_kernel(seq_len, t_chunk, hidden, unroll):
    """Builds the per-chunk LSTM kernel (static config closed over)."""
    H = hidden

    def kernel(x_ref, wih_ref, whh_ref, b_ref, c_ref, xp_ref, h_ref):
        # x_ref  : (t_chunk*Bp, E)  bf16   streamed embedded inputs (time-major)
        # wih_ref: (E, Gp)          bf16   W_ih^T, packed gates, resident
        # whh_ref: (H, Gp)          bf16   W_hh^T, packed gates, resident
        # b_ref  : (1, Gp)          f32    b_ih + b_hh
        # c_ref  : (Bp, H)          f32    OUTPUT; also the resident c carry
        # xp_ref : (t_chunk*Bp, Gp) f32    scratch: chunk input projection
        # h_ref  : (Bp, H)          f32    scratch: h carry across chunks
        Bp = h_ref.shape[0]
        Gp = whh_ref.shape[1]
        chunk = pl.program_id(0)

        @pl.when(chunk == 0)
        def _init():
            h_ref[...] = jnp.zeros_like(h_ref)
            c_ref[...] = jnp.zeros_like(c_ref)

        # Chunk-batched input projection: one MXU matmul off the serial path,
        # bias folded in here so the serial loop is just add + recurrent matmul.
        xp_ref[...] = (
            jnp.dot(x_ref[...], wih_ref[...], preferred_element_type=jnp.float32)
            + b_ref[...])

        # Loop-invariant recurrent weights: 2 vregs at H=32 (packed layout).
        # TODO(synk): when the serial loop is MXU-bound, hold W_hh^T in the MXU
        # across steps via pltpu.matmul_push_rhs / matmul_acc_lhs / matmul_pop
        # instead of re-pushing it with jnp.dot every iteration.
        whh = whh_ref[...]
        base = chunk * t_chunk

        def step(t, carry):
            h, c = carry                                   # f32 (Bp, H) in vregs
            row = pl.multiple_of(t * Bp, Bp)
            gates = xp_ref[pl.ds(row, Bp), :] + jnp.dot(
                h.astype(jnp.bfloat16), whh, preferred_element_type=jnp.float32)
            # Packed gate layout (i|f|g|o, each H lanes wide): activate the full
            # vreg once on the EUP, then align each gate block to lane 0 with an
            # XLU lane roll and take an offset-0 slice.
            sig = jax.nn.sigmoid(gates)
            tnh = jnp.tanh(gates)
            i_g = sig[:, :H]
            f_g = pltpu.roll(sig, Gp - 1 * H, axis=1)[:, :H]
            g_g = pltpu.roll(tnh, Gp - 2 * H, axis=1)[:, :H]
            o_g = pltpu.roll(sig, Gp - 3 * H, axis=1)[:, :H]
            c_new = f_g * c + i_g * g_g
            h_new = o_g * jnp.tanh(c_new)
            # Mask padded tail timesteps so arbitrary T stays correct.
            valid = (base + t) < seq_len
            return (jnp.where(valid, h_new, h), jnp.where(valid, c_new, c))

        h_fin, c_fin = lax.fori_loop(0, t_chunk, step,
                                     (h_ref[...], c_ref[...]), unroll=unroll)
        h_ref[...] = h_fin
        c_ref[...] = c_fin   # resident output block; written back to HBM once

    return kernel


def char_rnn_forward(x_ids, emb, w_ih, w_hh, b_ih, b_hh, *, t_chunk=128):
    """CharRNN.forward.  x_ids: (B, T) int ids.  Returns c_n of shape (1, B, H)."""
    B, T = x_ids.shape
    V, E = emb.shape
    H = w_hh.shape[1]
    G = 4 * H
    Gp = _round_up(G, 128)      # pad the packed gate dim to a lane multiple
    Bp = _round_up(B, 8)        # pad batch to full f32 sublanes

    # ---- Chunk sizing: keep double-buffered blocks + scratch well under the
    # v7x budget (64 MiB physical VMEM; aim <= ~24 MiB so 2x slack remains).
    t_chunk = max(1, min(t_chunk, T))

    def vmem_bytes(tc):
        xe = tc * Bp * E * 2                         # bf16 x_emb block
        const = (E + H) * Gp * 2 + Gp * 4            # wih + whh bf16, bias f32
        outb = Bp * H * 4                            # resident c block
        scr = tc * Bp * Gp * 4 + Bp * H * 4          # x_proj chunk + h carry
        return 2 * (xe + const + outb) + scr         # 2x ~ double buffering

    while t_chunk > 1 and vmem_bytes(t_chunk) > (24 << 20):
        t_chunk //= 2
    Tp = _round_up(T, t_chunk)
    n_chunks = Tp // t_chunk

    f32, bf16 = jnp.float32, jnp.bfloat16

    # ---- One-time parameter packing (off the serial path). -------------------
    # Packed gate layout: columns [k*H, (k+1)*H) hold gate k in order i, f, g, o.
    wih = jnp.pad(w_ih.T.astype(f32), ((0, 0), (0, Gp - G))).astype(bf16)   # (E, Gp)
    whh = jnp.pad(w_hh.T.astype(f32), ((0, 0), (0, Gp - G))).astype(bf16)   # (H, Gp)
    bias = jnp.pad((b_ih + b_hh).astype(f32), (0, Gp - G)).reshape(1, Gp)   # (1, Gp)

    # bf16 embedded inputs gathered directly in time-major order (no big
    # transpose, no one-hot).  Padded ids use token 0; those rows/steps compute
    # junk that is masked (tail steps) or sliced off (batch rows) below.
    ids = jnp.pad(x_ids.astype(jnp.int32).T, ((0, Tp - T), (0, Bp - B)))    # (Tp, Bp)
    x_emb = emb.astype(bf16)[ids.reshape(-1)]                               # (Tp*Bp, E)

    kernel = _make_lstm_kernel(seq_len=T, t_chunk=t_chunk, hidden=H,
                               unroll=min(t_chunk, 8))

    c_pad = pl.pallas_call(
        kernel,
        out_shape=jax.ShapeDtypeStruct((Bp, H), f32),
        grid_spec=pltpu.PrefetchScalarGridSpec(
            num_scalar_prefetch=0,
            grid=(n_chunks,),
            in_specs=[
                pl.BlockSpec((t_chunk * Bp, E), lambda t: (t, 0)),  # streamed x_emb
                pl.BlockSpec((E, Gp), lambda t: (0, 0)),            # W_ih^T (DMA'd once)
                pl.BlockSpec((H, Gp), lambda t: (0, 0)),            # W_hh^T (DMA'd once)
                pl.BlockSpec((1, Gp), lambda t: (0, 0)),            # fused bias
            ],
            out_specs=pl.BlockSpec((Bp, H), lambda t: (0, 0)),      # resident c carry
            scratch_shapes=[
                pltpu.VMEM((t_chunk * Bp, Gp), f32),                # chunk x_proj
                pltpu.VMEM((Bp, H), f32),                           # h carry
            ],
        ),
        compiler_params=pltpu.CompilerParams(
            # The single grid axis is the serial T-chunk recurrence.
            # TODO(synk): add a "parallel" batch grid axis (v7x has 2 TensorCores)
            # once B is large enough to split into two >=8-sublane halves.
            dimension_semantics=("arbitrary",),
            vmem_limit_bytes=int(min(48 << 20,
                                     max(4 << 20, 2 * vmem_bytes(t_chunk)))),
        ),
    )(x_emb, wih, whh, bias)

    return c_pad[:B, :][None, :, :]   # (1, B, H) == PyTorch c_n


def char_rnn_reference(x_ids, emb, w_ih, w_hh, b_ih, b_hh):
    """Pure-JAX reference matching torch.nn.LSTM semantics (gate order i,f,g,o)."""
    x = emb[x_ids]                       # (B, T, E)
    B, T, _ = x.shape
    H = w_hh.shape[1]

    def step(carry, x_t):
        h, c = carry
        gates = x_t @ w_ih.T + h @ w_hh.T + b_ih + b_hh
        i, f, g, o = jnp.split(gates, 4, axis=-1)
        i, f, o = jax.nn.sigmoid(i), jax.nn.sigmoid(f), jax.nn.sigmoid(o)
        g = jnp.tanh(g)
        c = f * c + i * g
        h = o * jnp.tanh(c)
        return (h, c), None

    init = (jnp.zeros((B, H), jnp.float32), jnp.zeros((B, H), jnp.float32))
    (h, c), _ = lax.scan(step, init, x.transpose(1, 0, 2))
    return c[None, :, :]


if __name__ == "__main__":
    # Small shapes consistent with the module: emb_dim must equal input_size.
    V = 32          # input_size (vocab)
    E = 32          # emb_dim (== input_size, required by the module's LSTM)
    H = 32          # hidden_size
    B, T = 2, 8     # batch, sequence length

    key = jax.random.PRNGKey(0)
    k_ids, k_emb, k_wih, k_whh, k_bih, k_bhh = jax.random.split(key, 6)

    scale = 1.0 / jnp.sqrt(H)
    x_ids = jax.random.randint(k_ids, (B, T), 0, V, dtype=jnp.int32)
    emb = jax.random.normal(k_emb, (V, E), dtype=jnp.float32)
    w_ih = jax.random.uniform(k_wih, (4 * H, E), jnp.float32, -scale, scale)
    w_hh = jax.random.uniform(k_whh, (4 * H, H), jnp.float32, -scale, scale)
    b_ih = jax.random.uniform(k_bih, (4 * H,), jnp.float32, -scale, scale)
    b_hh = jax.random.uniform(k_bhh, (4 * H,), jnp.float32, -scale, scale)

    # t_chunk=3 deliberately exercises the multi-chunk carry AND the masked
    # padded-tail path (T=8 -> 3 chunks of 3 with one masked step).
    out = char_rnn_forward(x_ids, emb, w_ih, w_hh, b_ih, b_hh, t_chunk=3)
    out = jax.block_until_ready(out)

    ref = char_rnn_reference(x_ids, emb, w_ih, w_hh, b_ih, b_hh)
    assert out.shape == (1, B, H), out.shape
    # bf16 at the MXU boundary (embeddings, W_ih, W_hh, h) with f32 accumulation
    # -> looser tolerance vs the pure-f32 reference, as flagged in the review.
    assert jnp.allclose(out, ref, atol=5e-2, rtol=5e-2), "mismatch vs reference"

    print("KERNEL_OK")
</pallas_src>

<mosaic_0001>
module attributes {stable_mosaic.version = 11 : i64} {
  func.func @kernel(%arg0: i32, %arg1: memref<24x32xbf16, #tpu.memory_space<vmem>>, %arg2: memref<32x128xbf16, #tpu.memory_space<vmem>>, %arg3: memref<32x128xbf16, #tpu.memory_space<vmem>>, %arg4: memref<1x128xf32, #tpu.memory_space<vmem>>, %arg5: memref<8x32xf32, #tpu.memory_space<vmem>>, %arg6: memref<24x128xf32, #tpu.memory_space<vmem>>, %arg7: memref<8x32xf32, #tpu.memory_space<vmem>>) attributes {dimension_semantics = [#tpu.dimension_semantics<arbitrary>], iteration_bounds = array<i64: 3>, scalar_prefetch = 0 : i64, scratch_operands = 2 : i64, tpu.core_type = #tpu.core_type<tc>, window_params = [{transform_indices = @transform_0, window_bounds = array<i64: 24, 32>}, {pipeline_mode = #tpu.pipeline_mode<synchronous>, transform_indices = @transform_1, window_bounds = array<i64: 32, 128>}, {pipeline_mode = #tpu.pipeline_mode<synchronous>, transform_indices = @transform_2, window_bounds = array<i64: 32, 128>}, {pipeline_mode = #tpu.pipeline_mode<synchronous>, transform_indices = @transform_3, window_bounds = array<i64: 1, 128>}, {pipeline_mode = #tpu.pipeline_mode<synchronous>, transform_indices = @transform_4, window_bounds = array<i64: 8, 32>}]} {
    %c0_i32 = arith.constant 0 : i32
    %0 = arith.cmpi eq, %arg0, %c0_i32 : i32
    %1 = arith.extui %0 : i1 to i32
    %c0_i32_0 = arith.constant 0 : i32
    %2 = arith.cmpi ne, %1, %c0_i32_0 : i32
    scf.if %2 {
      %cst_40 = arith.constant 0.000000e+00 : f32
      %103 = vector.broadcast %cst_40 : f32 to vector<8x32xf32>
      %c0_41 = arith.constant 0 : index
      %c0_42 = arith.constant 0 : index
      %104 = vector.load %arg7[%c0_41, %c0_42] : memref<8x32xf32, #tpu.memory_space<vmem>>, vector<8x32xf32>
      tpu.vector_store %arg7[%c0_41, %c0_42], %103 {strides = array<i32>} : memref<8x32xf32, #tpu.memory_space<vmem>>, vector<8x32xf32>,
      %cst_43 = arith.constant 0.000000e+00 : f32
      %105 = vector.broadcast %cst_43 : f32 to vector<8x32xf32>
      %c0_44 = arith.constant 0 : index
      %c0_45 = arith.constant 0 : index
      %106 = vector.load %arg5[%c0_44, %c0_45] : memref<8x32xf32, #tpu.memory_space<vmem>>, vector<8x32xf32>
      tpu.vector_store %arg5[%c0_44, %c0_45], %105 {strides = array<i32>} : memref<8x32xf32, #tpu.memory_space<vmem>>, vector<8x32xf32>,
    } else {
    }
    %c0 = arith.constant 0 : index
    %c0_1 = arith.constant 0 : index
    %3 = vector.load %arg1[%c0, %c0_1] : memref<24x32xbf16, #tpu.memory_space<vmem>>, vector<24x32xbf16>
    %c0_2 = arith.constant 0 : index
    %c0_3 = arith.constant 0 : index
    %4 = vector.load %arg2[%c0_2, %c0_3] : memref<32x128xbf16, #tpu.memory_space<vmem>>, vector<32x128xbf16>
    %cst = arith.constant dense<0.000000e+00> : vector<24x128xf32>
    %5 = tpu.matmul %3, %4, %cst {dimension_numbers = #tpu.dot_dimension_numbers<[1], [0], [0], [1], [0, 0, 1, 1], [], []>} : vector<24x32xbf16>, vector<32x128xbf16>, vector<24x128xf32> -> vector<24x128xf32>
    %c0_4 = arith.constant 0 : index
    %c0_5 = arith.constant 0 : index
    %6 = vector.load %arg4[%c0_4, %c0_5] : memref<1x128xf32, #tpu.memory_space<vmem>>, vector<1x128xf32>
    %7 = vector.broadcast %6 : vector<1x128xf32> to vector<24x128xf32>
    %8 = arith.addf %5, %7 : vector<24x128xf32>
    %c0_6 = arith.constant 0 : index
    %c0_7 = arith.constant 0 : index
    %9 = vector.load %arg6[%c0_6, %c0_7] : memref<24x128xf32, #tpu.memory_space<vmem>>, vector<24x128xf32>
    tpu.vector_store %arg6[%c0_6, %c0_7], %8 {strides = array<i32>} : memref<24x128xf32, #tpu.memory_space<vmem>>, vector<24x128xf32>,
    %c0_8 = arith.constant 0 : index
    %c0_9 = arith.constant 0 : index
    %10 = vector.load %arg3[%c0_8, %c0_9] : memref<32x128xbf16, #tpu.memory_space<vmem>>, vector<32x128xbf16>
    %c3_i32 = arith.constant 3 : i32
    %11 = arith.muli %arg0, %c3_i32 : i32
    %c0_10 = arith.constant 0 : index
    %c0_11 = arith.constant 0 : index
    %12 = vector.load %arg7[%c0_10, %c0_11] : memref<8x32xf32, #tpu.memory_space<vmem>>, vector<8x32xf32>
    %c0_12 = arith.constant 0 : index
    %c0_13 = arith.constant 0 : index
    %13 = vector.load %arg5[%c0_12, %c0_13] : memref<8x32xf32, #tpu.memory_space<vmem>>, vector<8x32xf32>
    %c0_i32_14 = arith.constant 0 : i32
    %c8_i32 = arith.constant 8 : i32
    %14 = arith.muli %c0_i32_14, %c8_i32 : i32
    %15 = tpu.assume_multiple %14, 8 : i32
    %16 = arith.index_cast %15 : i32 to index
    %c0_15 = arith.constant 0 : index
    %17 = vector.load %arg6[%16, %c0_15] : memref<24x128xf32, #tpu.memory_space<vmem>>, vector<8x128xf32>
    %18 = arith.truncf %12 : vector<8x32xf32> to vector<8x32xbf16>
    %cst_16 = arith.constant dense<0.000000e+00> : vector<8x128xf32>
    %19 = tpu.matmul %18, %10, %cst_16 {dimension_numbers = #tpu.dot_dimension_numbers<[1], [0], [0], [1], [0, 0, 1, 1], [], []>} : vector<8x32xbf16>, vector<32x128xbf16>, vector<8x128xf32> -> vector<8x128xf32>
    %20 = arith.addf %17, %19 : vector<8x128xf32>
    %21 = arith.negf %20 : vector<8x128xf32>
    %22 = math.exp %21 : vector<8x128xf32>
    %cst_17 = arith.constant 1.000000e+00 : f32
    %23 = vector.broadcast %cst_17 : f32 to vector<8x128xf32>
    %24 = arith.addf %23, %22 : vector<8x128xf32>
    %25 = arith.divf %23, %24 : vector<8x128xf32>
    %26 = math.tanh %20 : vector<8x128xf32>
    %27 = vector.extract_strided_slice %25 {offsets = [0, 0], sizes = [8, 32], strides = [1, 1]} : vector<8x128xf32> to vector<8x32xf32>
    %c96_i32 = arith.constant 96 : i32
    %28 = tpu.dynamic_rotate %25 by %c96_i32 dim 1 : vector<8x128xf32>, i32 -> vector<8x128xf32>
    %29 = vector.extract_strided_slice %28 {offsets = [0, 0], sizes = [8, 32], strides = [1, 1]} : vector<8x128xf32> to vector<8x32xf32>
    %c64_i32 = arith.constant 64 : i32
    %30 = tpu.dynamic_rotate %26 by %c64_i32 dim 1 : vector<8x128xf32>, i32 -> vector<8x128xf32>
    %31 = vector.extract_strided_slice %30 {offsets = [0, 0], sizes = [8, 32], strides = [1, 1]} : vector<8x128xf32> to vector<8x32xf32>
    %c32_i32 = arith.constant 32 : i32
    %32 = tpu.dynamic_rotate %25 by %c32_i32 dim 1 : vector<8x128xf32>, i32 -> vector<8x128xf32>
    %33 = vector.extract_strided_slice %32 {offsets = [0, 0], sizes = [8, 32], strides = [1, 1]} : vector<8x128xf32> to vector<8x32xf32>
    %34 = arith.mulf %29, %13 : vector<8x32xf32>
    %35 = arith.mulf %27, %31 : vector<8x32xf32>
    %36 = arith.addf %34, %35 : vector<8x32xf32>
    %37 = math.tanh %36 : vector<8x32xf32>
    %38 = arith.mulf %33, %37 : vector<8x32xf32>
    %39 = arith.addi %11, %c0_i32_14 : i32
    %c8_i32_18 = arith.constant 8 : i32
    %40 = arith.cmpi slt, %39, %c8_i32_18 : i32
    %41 = arith.select %40, %38, %12 : vector<8x32xf32>
    %42 = arith.select %40, %36, %13 : vector<8x32xf32>
    %c1_i32 = arith.constant 1 : i32
    %c8_i32_19 = arith.constant 8 : i32
    %43 = arith.muli %c1_i32, %c8_i32_19 : i32
    %44 = tpu.assume_multiple %43, 8 : i32
    %45 = arith.index_cast %44 : i32 to index
    %c0_20 = arith.constant 0 : index
    %46 = vector.load %arg6[%45, %c0_20] : memref<24x128xf32, #tpu.memory_space<vmem>>, vector<8x128xf32>
    %47 = arith.truncf %41 : vector<8x32xf32> to vector<8x32xbf16>
    %cst_21 = arith.constant dense<0.000000e+00> : vector<8x128xf32>
    %48 = tpu.matmul %47, %10, %cst_21 {dimension_numbers = #tpu.dot_dimension_numbers<[1], [0], [0], [1], [0, 0, 1, 1], [], []>} : vector<8x32xbf16>, vector<32x128xbf16>, vector<8x128xf32> -> vector<8x128xf32>
    %49 = arith.addf %46, %48 : vector<8x128xf32>
    %50 = arith.negf %49 : vector<8x128xf32>
    %51 = math.exp %50 : vector<8x128xf32>
    %cst_22 = arith.constant 1.000000e+00 : f32
    %52 = vector.broadcast %cst_22 : f32 to vector<8x128xf32>
    %53 = arith.addf %52, %51 : vector<8x128xf32>
    %54 = arith.divf %52, %53 : vector<8x128xf32>
    %55 = math.tanh %49 : vector<8x128xf32>
    %56 = vector.extract_strided_slice %54 {offsets = [0, 0], sizes = [8, 32], strides = [1, 1]} : vector<8x128xf32> to vector<8x32xf32>
    %c96_i32_23 = arith.constant 96 : i32
    %57 = tpu.dynamic_rotate %54 by %c96_i32_23 dim 1 : vector<8x128xf32>, i32 -> vector<8x128xf32>
    %58 = vector.extract_strided_slice %57 {offsets = [0, 0], sizes = [8, 32], strides = [1, 1]} : vector<8x128xf32> to vector<8x32xf32>
    %c64_i32_24 = arith.constant 64 : i32
    %59 = tpu.dynamic_rotate %55 by %c64_i32_24 dim 1 : vector<8x128xf32>, i32 -> vector<8x128xf32>
    %60 = vector.extract_strided_slice %59 {offsets = [0, 0], sizes = [8, 32], strides = [1, 1]} : vector<8x128xf32> to vector<8x32xf32>
    %c32_i32_25 = arith.constant 32 : i32
    %61 = tpu.dynamic_rotate %54 by %c32_i32_25 dim 1 : vector<8x128xf32>, i32 -> vector<8x128xf32>
    %62 = vector.extract_strided_slice %61 {offsets = [0, 0], sizes = [8, 32], strides = [1, 1]} : vector<8x128xf32> to vector<8x32xf32>
    %63 = arith.mulf %58, %42 : vector<8x32xf32>
    %64 = arith.mulf %56, %60 : vector<8x32xf32>
    %65 = arith.addf %63, %64 : vector<8x32xf32>
    %66 = math.tanh %65 : vector<8x32xf32>
    %67 = arith.mulf %62, %66 : vector<8x32xf32>
    %68 = arith.addi %11, %c1_i32 : i32
    %c8_i32_26 = arith.constant 8 : i32
    %69 = arith.cmpi slt, %68, %c8_i32_26 : i32
    %70 = arith.select %69, %67, %41 : vector<8x32xf32>
    %71 = arith.select %69, %65, %42 : vector<8x32xf32>
    %c2_i32 = arith.constant 2 : i32
    %c8_i32_27 = arith.constant 8 : i32
    %72 = arith.muli %c2_i32, %c8_i32_27 : i32
    %73 = tpu.assume_multiple %72, 8 : i32
    %74 = arith.index_cast %73 : i32 to index
    %c0_28 = arith.constant 0 : index
    %75 = vector.load %arg6[%74, %c0_28] : memref<24x128xf32, #tpu.memory_space<vmem>>, vector<8x128xf32>
    %76 = arith.truncf %70 : vector<8x32xf32> to vector<8x32xbf16>
    %cst_29 = arith.constant dense<0.000000e+00> : vector<8x128xf32>
    %77 = tpu.matmul %76, %10, %cst_29 {dimension_numbers = #tpu.dot_dimension_numbers<[1], [0], [0], [1], [0, 0, 1, 1], [], []>} : vector<8x32xbf16>, vector<32x128xbf16>, vector<8x128xf32> -> vector<8x128xf32>
    %78 = arith.addf %75, %77 : vector<8x128xf32>
    %79 = arith.negf %78 : vector<8x128xf32>
    %80 = math.exp %79 : vector<8x128xf32>
    %cst_30 = arith.constant 1.000000e+00 : f32
    %81 = vector.broadcast %cst_30 : f32 to vector<8x128xf32>
    %82 = arith.addf %81, %80 : vector<8x128xf32>
    %83 = arith.divf %81, %82 : vector<8x128xf32>
    %84 = math.tanh %78 : vector<8x128xf32>
    %85 = vector.extract_strided_slice %83 {offsets = [0, 0], sizes = [8, 32], strides = [1, 1]} : vector<8x128xf32> to vector<8x32xf32>
    %c96_i32_31 = arith.constant 96 : i32
    %86 = tpu.dynamic_rotate %83 by %c96_i32_31 dim 1 : vector<8x128xf32>, i32 -> vector<8x128xf32>
    %87 = vector.extract_strided_slice %86 {offsets = [0, 0], sizes = [8, 32], strides = [1, 1]} : vector<8x128xf32> to vector<8x32xf32>
    %c64_i32_32 = arith.constant 64 : i32
    %88 = tpu.dynamic_rotate %84 by %c64_i32_32 dim 1 : vector<8x128xf32>, i32 -> vector<8x128xf32>
    %89 = vector.extract_strided_slice %88 {offsets = [0, 0], sizes = [8, 32], strides = [1, 1]} : vector<8x128xf32> to vector<8x32xf32>
    %c32_i32_33 = arith.constant 32 : i32
    %90 = tpu.dynamic_rotate %83 by %c32_i32_33 dim 1 : vector<8x128xf32>, i32 -> vector<8x128xf32>
    %91 = vector.extract_strided_slice %90 {offsets = [0, 0], sizes = [8, 32], strides = [1, 1]} : vector<8x128xf32> to vector<8x32xf32>
    %92 = arith.mulf %87, %71 : vector<8x32xf32>
    %93 = arith.mulf %85, %89 : vector<8x32xf32>
    %94 = arith.addf %92, %93 : vector<8x32xf32>
    %95 = math.tanh %94 : vector<8x32xf32>
    %96 = arith.mulf %91, %95 : vector<8x32xf32>
    %97 = arith.addi %11, %c2_i32 : i32
    %c8_i32_34 = arith.constant 8 : i32
    %98 = arith.cmpi slt, %97, %c8_i32_34 : i32
    %99 = arith.select %98, %96, %70 : vector<8x32xf32>
    %100 = arith.select %98, %94, %71 : vector<8x32xf32>
    %c3_i32_35 = arith.constant 3 : i32
    %c0_36 = arith.constant 0 : index
    %c0_37 = arith.constant 0 : index
    %101 = vector.load %arg7[%c0_36, %c0_37] : memref<8x32xf32, #tpu.memory_space<vmem>>, vector<8x32xf32>
    tpu.vector_store %arg7[%c0_36, %c0_37], %99 {strides = array<i32>} : memref<8x32xf32, #tpu.memory_space<vmem>>, vector<8x32xf32>,
    %c0_38 = arith.constant 0 : index
    %c0_39 = arith.constant 0 : index
    %102 = vector.load %arg5[%c0_38, %c0_39] : memref<8x32xf32, #tpu.memory_space<vmem>>, vector<8x32xf32>
    tpu.vector_store %arg5[%c0_38, %c0_39], %100 {strides = array<i32>} : memref<8x32xf32, #tpu.memory_space<vmem>>, vector<8x32xf32>,
    return
  }
  func.func @transform_0(%arg0: i32) -> (i32, i32) {
    %c0_i32 = arith.constant 0 : i32
    %c0_i32_0 = arith.constant 0 : i32
    return %arg0, %c0_i32 : i32, i32
  }
  func.func @transform_1(%arg0: i32) -> (i32, i32) {
    %c0_i32 = arith.constant 0 : i32
    %c0_i32_0 = arith.constant 0 : i32
    %c0_i32_1 = arith.constant 0 : i32
    return %c0_i32, %c0_i32_0 : i32, i32
  }
  func.func @transform_2(%arg0: i32) -> (i32, i32) {
    %c0_i32 = arith.constant 0 : i32
    %c0_i32_0 = arith.constant 0 : i32
    %c0_i32_1 = arith.constant 0 : i32
    return %c0_i32, %c0_i32_0 : i32, i32
  }
  func.func @transform_3(%arg0: i32) -> (i32, i32) {
    %c0_i32 = arith.constant 0 : i32
    %c0_i32_0 = arith.constant 0 : i32
    %c0_i32_1 = arith.constant 0 : i32
    return %c0_i32, %c0_i32_0 : i32, i32
  }
  func.func @transform_4(%arg0: i32) -> (i32, i32) {
    %c0_i32 = arith.constant 0 : i32
    %c0_i32_0 = arith.constant 0 : i32
    %c0_i32_1 = arith.constant 0 : i32
    return %c0_i32, %c0_i32_0 : i32, i32
  }
}

</mosaic_0001>

<llo_original>
// kernel: tpu_custom_call.1
$region0: #{tpu_custom_call.1}
  #allocation0 [shape = 'u32[]', space=smem, size = 0x4, offset = 0x4, fixed_abs, tag = 'smem constant byte address 0x4 - core index']
  #allocation1 [shape = 'u32[72,128]{1,0:T(1,128)}', space=vmem, size = 0x9000, scoped, tag = 'internal scratch']
  #allocation2 [shape = 'f32[24,128]{1,0:T(8,128)}', space=vmem, size = 0x3000, scoped, tag = 'scratch operand']
  #allocation3 [shape = 'f32[8,32]{1,0:T(8,128)}', space=vmem, size = 0x1000, scoped, tag = 'scratch operand']
  %s0 = inlined_call_operand.vmem [shape: bf16[72,32], index: 0, kind: input, shape index: {}]
  %s1 = inlined_call_operand.vmem [shape: bf16[32,128], index: 1, kind: input, shape index: {}]
  %s2 = inlined_call_operand.vmem [shape: bf16[32,128], index: 2, kind: input, shape index: {}]
  %s3 = inlined_call_operand.vmem [shape: f32[1,128], index: 3, kind: input, shape index: {}]
  %s4 = inlined_call_operand.hbm [shape: f32[8,32], index: 4, kind: output, shape index: {}]
  %s5 = sld [smem:[#allocation0]]
  $region53: #{tpu_custom_call.1} parent=0
    _
  %s7 = ssub.s32 1, %s5
  %s8 = scalar_select 0, %s7, %s5
  $region1: #{tpu_custom_call.1} parent=0
    #allocation4 [shape = 'u8[4096]{0}', space=vmem, size = 0x1000, scoped, tag = 'output window, operand 0, single buffered']
    #allocation5 [shape = 's32[2]{0}', space=sflag, size = 0x8, scoped, tag = 'scoped memory for tpu_custom_call.1']
    %9 = vsyncpa [#allocation5], 0
    loop: start=0, step=1, limit=5
    $region2: #{tpu_custom_call.1} parent=1 // loop_pre_header
      _
    $region3: #{tpu_custom_call.1} parent=1 // loop_header
      %s11 = sphi 0, %s15
      %p12 = scmp.ge.s32.totalorder %s11, 5
      %s21 = sphi 0, %s23
      %s24 = sphi 0, %s21
      %s25 = sphi 0, %s24
      %s41 = sphi 0, %s25
      %s45 = sphi 0, %s45
      %s47 = sphi 0, %s45
      %s48 = sphi 0, %s47
      %s62 = sphi 0, %s48
      %s66 = sphi 0, %s66
      %s68 = sphi 0, %s66
      %s69 = sphi 0, %s68
      %s83 = sphi 0, %s69
      %s87 = sphi 0, %s87
      %s89 = sphi 0, %s87
      %s90 = sphi 0, %s89
      %s104 = sphi 0, %s90
      %s108 = sphi 0, %s108
      %s110 = sphi 0, %s108
      %s111 = sphi 0, %s110
      %s125 = sphi 0, %s111
    $region4: #{tpu_custom_call.1} parent=1 // loop_header_branch
      %14 = sbr.rel (%p12) target = $region8
    $region5: #{tpu_custom_call.1} parent=1 // loop_body
      %s16 = ssub.s32 %s11, 1
      %s17 = ssub.s32 %s11, 2
      %s18 = sadd.s32 %s11, 1
      %s19 = ssub.s32 %s11, %s18
      %p20 = scmp.eq.s32.totalorder %s19, 0
      %s22 = sadd.s32 %s21, 1
      %s23 = scalar_select %p20, %s21, %s22
      %p26 = pneg %p20
      %p27 = scmp.eq.s32.totalorder %s11, 2
      %p28 = por %p26, %p27
      %p29 = scmp.ne.s32.totalorder %s21, %s24
      %p30 = scmp.eq.s32.totalorder %s11, 0
      %p31 = por %p29, %p30
      %p32 = scmp.ne.s32.totalorder %s21, %s24
      %p33 = scmp.eq.s32.totalorder %s16, 2
      %p34 = por %p32, %p33
      %p35 = scmp.ne.s32.totalorder %s24, %s25
      %p36 = scmp.eq.s32.totalorder %s16, 0
      %p37 = por %p35, %p36
      %p38 = scmp.ne.s32.totalorder %s24, %s25
      %p39 = scmp.eq.s32.totalorder %s17, 2
      %p40 = por %p38, %p39
      %p42 = scmp.ne.s32.totalorder %s25, %s41
      %p43 = scmp.eq.s32.totalorder %s17, 0
      %p44 = por %p42, %p43
      %s46 = sadd.s32 %s45, 1
      %p49 = scmp.eq.s32.totalorder %s11, 2
      %p50 = scmp.ne.s32.totalorder %s45, %s47
      %p51 = scmp.eq.s32.totalorder %s11, 0
      %p52 = por %p50, %p51
      %p53 = scmp.ne.s32.totalorder %s45, %s47
      %p54 = scmp.eq.s32.totalorder %s16, 2
      %p55 = por %p53, %p54
      %p56 = scmp.ne.s32.totalorder %s47, %s48
      %p57 = scmp.eq.s32.totalorder %s16, 0
      %p58 = por %p56, %p57
      %p59 = scmp.ne.s32.totalorder %s47, %s48
      %p60 = scmp.eq.s32.totalorder %s17, 2
      %p61 = por %p59, %p60
      %p63 = scmp.ne.s32.totalorder %s48, %s62
      %p64 = scmp.eq.s32.totalorder %s17, 0
      %p65 = por %p63, %p64
      %s67 = sadd.s32 %s66, 1
      %p70 = scmp.eq.s32.totalorder %s11, 2
      %p71 = scmp.ne.s32.totalorder %s66, %s68
      %p72 = scmp.eq.s32.totalorder %s11, 0
      %p73 = por %p71, %p72
      %p74 = scmp.ne.s32.totalorder %s66, %s68
      %p75 = scmp.eq.s32.totalorder %s16, 2
      %p76 = por %p74, %p75
      %p77 = scmp.ne.s32.totalorder %s68, %s69
      %p78 = scmp.eq.s32.totalorder %s16, 0
      %p79 = por %p77, %p78
      %p80 = scmp.ne.s32.totalorder %s68, %s69
      %p81 = scmp.eq.s32.totalorder %s17, 2
      %p82 = por %p80, %p81
      %p84 = scmp.ne.s32.totalorder %s69, %s83
      %p85 = scmp.eq.s32.totalorder %s17, 0
      %p86 = por %p84, %p85
      %s88 = sadd.s32 %s87, 1
      %p91 = scmp.eq.s32.totalorder %s11, 2
      %p92 = scmp.ne.s32.totalorder %s87, %s89
      %p93 = scmp.eq.s32.totalorder %s11, 0
      %p94 = por %p92, %p93
      %p95 = scmp.ne.s32.totalorder %s87, %s89
      %p96 = scmp.eq.s32.totalorder %s16, 2
      %p97 = por %p95, %p96
      %p98 = scmp.ne.s32.totalorder %s89, %s90
      %p99 = scmp.eq.s32.totalorder %s16, 0
      %p100 = por %p98, %p99
      %p101 = scmp.ne.s32.totalorder %s89, %s90
      %p102 = scmp.eq.s32.totalorder %s17, 2
      %p103 = por %p101, %p102
      %p105 = scmp.ne.s32.totalorder %s90, %s104
      %p106 = scmp.eq.s32.totalorder %s17, 0
      %p107 = por %p105, %p106
      %s109 = sadd.s32 %s108, 1
      %p112 = scmp.eq.s32.totalorder %s11, 2
      %p113 = scmp.ne.s32.totalorder %s108, %s110
      %p114 = scmp.eq.s32.totalorder %s11, 0
      %p115 = por %p113, %p114
      %p116 = scmp.ne.s32.totalorder %s108, %s110
      %p117 = scmp.eq.s32.totalorder %s16, 2
      %p118 = por %p116, %p117
      %p119 = scmp.ne.s32.totalorder %s110, %s111
      %p120 = scmp.eq.s32.totalorder %s16, 0
      %p121 = por %p119, %p120
      %p122 = scmp.ne.s32.totalorder %s110, %s111
      %p123 = scmp.eq.s32.totalorder %s17, 2
      %p124 = por %p122, %p123
      %p126 = scmp.ne.s32.totalorder %s111, %s125
      %p127 = scmp.eq.s32.totalorder %s17, 0
      %p128 = por %p126, %p127
      %p129 = scmp.le.s32.totalorder 1, %s11
      %p130 = scmp.lt.s32.totalorder %s11, 4
      %p131 = pnand %p129, %p130
      %p132 = pneg %p131
      // Predicated region
      $region9: #{tpu_custom_call.1} parent=5 // pred_check
        _
      $region10: #{tpu_custom_call.1} parent=5 // pred_check_branch
        %134 = sbr.rel (%p131) target = $region12
      $region11: #{tpu_custom_call.1} parent=5 // pred_region
        %s135 = ssub.s32 %s11, 1
        // Predicated region
        $region13: #{tpu_custom_call.1} parent=11 // pred_check
          %p136 = pneg %p58
        $region14: #{tpu_custom_call.1} parent=11 // pred_check_branch
          %138 = sbr.rel (%p136) target = $region16
        $region15: #{tpu_custom_call.1} parent=11 // pred_region
          _
        $region16: #{tpu_custom_call.1} parent=11 // pred_fallthru
          _
        // Predicated region
        $region17: #{tpu_custom_call.1} parent=11 // pred_check
          %p139 = pneg %p79
        $region18: #{tpu_custom_call.1} parent=11 // pred_check_branch
          %141 = sbr.rel (%p139) target = $region20
        $region19: #{tpu_custom_call.1} parent=11 // pred_region
          _
        $region20: #{tpu_custom_call.1} parent=11 // pred_fallthru
          _
        // Predicated region
        $region21: #{tpu_custom_call.1} parent=11 // pred_check
          %p142 = pneg %p100
        $region22: #{tpu_custom_call.1} parent=11 // pred_check_branch
          %144 = sbr.rel (%p142) target = $region24
        $region23: #{tpu_custom_call.1} parent=11 // pred_region
          _
        $region24: #{tpu_custom_call.1} parent=11 // pred_fallthru
          _
      $region12: #{tpu_custom_call.1} parent=5 // pred_fallthru
        _
      %p145 = scmp.lt.s32.totalorder %s11, 3
      // Predicated region
      $region25: #{tpu_custom_call.1} parent=5 // pred_check
        %p146 = pneg %p145
      $region26: #{tpu_custom_call.1} parent=5 // pred_check_branch
        %148 = sbr.rel (%p146) target = $region28
      $region27: #{tpu_custom_call.1} parent=5 // pred_region
        // Predicated region
        $region29: #{tpu_custom_call.1} parent=27 // pred_check
          %p149 = pneg %p31
        $region30: #{tpu_custom_call.1} parent=27 // pred_check_branch
          %151 = sbr.rel (%p149) target = $region32
        $region31: #{tpu_custom_call.1} parent=27 // pred_region
          %s152 = smul.u32 3, %s11
          %p153 = scmp.lt.s32.totalorder %s152, 8
          %s154 = scalar_select %p153, %s152, 8
          %s155 = smul.addr %s154, 4
          %s156 = scalar_lea.vmem %s0, %s155
          %s157 = smul.u32 3, %s11
        $region32: #{tpu_custom_call.1} parent=27 // pred_fallthru
          _
      $region28: #{tpu_custom_call.1} parent=5 // pred_fallthru
        _
      %p158 = scmp.le.s32.totalorder 1, %s11
      %p159 = scmp.lt.s32.totalorder %s11, 4
      %p160 = pnand %p158, %p159
      %p161 = pneg %p160
      // Predicated region
      $region33: #{tpu_custom_call.1} parent=5 // pred_check
        _
      $region34: #{tpu_custom_call.1} parent=5 // pred_check_branch
        %163 = sbr.rel (%p160) target = $region36
      $region35: #{tpu_custom_call.1} parent=5 // pred_region
        %s164 = ssub.s32 %s11, 1
        %s165 = smul.u32 3, %s16
        %p166 = scmp.lt.s32.totalorder %s165, 8
        %s167 = scalar_select %p166, %s165, 8
        %s168 = smul.addr %s167, 4
        %s169 = scalar_lea.vmem %s0, %s168
        %p170 = pneg %p37
        %p171 = pneg %p34
        %p172 = pneg %p58
        %p173 = pneg %p55
        %p174 = pneg %p79
        %p175 = pneg %p76
        %p176 = pneg %p100
        %p177 = pneg %p97
        %p178 = pneg %p121
        %p179 = pneg %p118
        %s180 = smul.u32 3, %s16
        %p181 = scmp.lt.s32.totalorder %s180, 8
        %s182 = scalar_select %p181, %s180, 8
        %s183 = smul.addr %s182, 4
        %s184 = scalar_lea.vmem %s0, %s183
        %s185 = smul.u32 3, %s16
        %p187 = scmp.eq.s32.totalorder %s16, 0
        // Predicated region
        $region37: #{tpu_custom_call.1} parent=35 // pred_check
          %p188 = pneg %p187
        $region38: #{tpu_custom_call.1} parent=35 // pred_check_branch
          %190 = sbr.rel (%p188) target = $region40
        $region39: #{tpu_custom_call.1} parent=35 // pred_region
          %vm191 = vcmask 261120
          %192 = vst.msk [vmem:[#allocation3] sm:$0xff] %vm191, 0.0
          %193 = vst.msk [vmem:[#allocation4] sm:$0xff] %vm191, 0.0
        $region40: #{tpu_custom_call.1} parent=35 // pred_fallthru
          _
        %v194 = vld [vmem:[%s184] sm:$0xf]
        %v195 = vld [vmem:[%s184 + $0x4] sm:$0xf]
        %v196 = vld [vmem:[%s184 + $0x8] sm:$0xf]
        %v197 = vld [vmem:[%s1] sm:$0xf]
        %v198 = vld [vmem:[%s1 + $0x4] sm:$0xf]
        %v199 = vld [vmem:[%s1 + $0x8] sm:$0xf]
        %v200 = vld [vmem:[%s1 + $0xc] sm:$0xf]
        %v201 = vld [vmem:[%s3] sm:$0x1]
        %v203 = vperm.slane %v201, 0
        %v208 = vunpack.c.l.b16 %v194
        %v209 = vunpack.c.l.b16 %v195
        %v210 = vunpack.c.l.b16 %v196
        %v211 = vpack.c.b16 %v209, %v208
        %v212 = vpack.c.b16 %v210, %v210
        %v217 = vunpack.c.l.b16 %v197
        %v218 = vunpack.c.l.b16 %v198
        %v219 = vunpack.c.l.b16 %v199
        %v220 = vunpack.c.l.b16 %v200
        %v221 = vpack.c.b16 %v218, %v217
        %v222 = vpack.c.b16 %v220, %v219
        %vm225 = vcmask 261120
        %v227 = vsel %vm225, %v211, 0
        %v230 = vsel %vm225, %v212, 0
        %232 = vmatpush.bf16.msra.mxu0 0
        %233 = vmatpush.bf16.msra.mxu0 0
        %234 = vmatpush.bf16.msra.mxu0 0
        %235 = vmatpush.bf16.msra.mxu0 0
        %236 = vmatpush.bf16.msra.mxu0 0
        %237 = vmatpush.bf16.msra.mxu0 0
        %238 = vmatpush.bf16.msra.mxu0 %v222
        %239 = vmatpush.bf16.msra.mxu0 %v221
        %240 = vmatmul.bf16.gmra.mxu0 %v227
        %v241 = vpop.f32.mrf.mxu0
        %v242 = vadd.f32 %v203, %v241
        %v243 = vpop.f32.mrf.mxu0
        %v244 = vadd.f32 %v203, %v243
        %245 = vmatmul.bf16.gmra.mxu0 %v230
        %v246 = vpop.f32.mrf.mxu0
        %v247 = vadd.f32 %v203, %v246
        %v248 = vpop.f32.mrf.mxu0
        %249 = vdwg.mxu0
        %250 = vst [vmem:[#allocation2] sm:$0xff] %v242
        %251 = vst [vmem:[#allocation2 + $0x8] sm:$0xff] %v244
        %252 = vst [vmem:[#allocation2 + $0x10] sm:$0xff] %v247
        %v253 = vld [vmem:[%s2] sm:$0xf]
        %v254 = vld [vmem:[%s2 + $0x4] sm:$0xf]
        %v255 = vld [vmem:[%s2 + $0x8] sm:$0xf]
        %v256 = vld [vmem:[%s2 + $0xc] sm:$0xf]
        %s257 = smul.u32 %s16, 3
        %v258 = vld [vmem:[#allocation3] sm:$0xff]
        %v259 = vld [vmem:[#allocation4] sm:$0xff]
        %v260 = vld [vmem:[#allocation2] sm:$0xff]
        %v261 = vpack.c.bf16 %v258, %v258
        %v266 = vunpack.c.l.b16 %v253
        %v267 = vunpack.c.l.b16 %v254
        %v268 = vunpack.c.l.b16 %v255
        %v269 = vunpack.c.l.b16 %v256
        %v270 = vpack.c.b16 %v267, %v266
        %v271 = vpack.c.b16 %v269, %v268
        %v275 = vsel %vm225, %v261, 0
        %277 = vmatpush.bf16.msra.mxu0 0
        %278 = vmatpush.bf16.msra.mxu0 0
        %279 = vmatpush.bf16.msra.mxu0 0
        %280 = vmatpush.bf16.msra.mxu0 0
        %281 = vmatpush.bf16.msra.mxu0 0
        %282 = vmatpush.bf16.msra.mxu0 0
        %283 = vmatpush.bf16.msra.mxu0 %v271
        %284 = vmatpush.bf16.msra.mxu0 %v270
        %285 = vmatmul.bf16.gmra.mxu0 %v275
        %v286 = vpop.f32.mrf.mxu0
        %v287 = vadd.f32 0.0, %v286
        %v288 = vpop.f32.mrf.mxu0
        %289 = vdwg.mxu0
        %v290 = vadd.f32 %v260, %v287
        %v291 = vxor.u32 %v290, 2147483648
        %v292 = vmul.f32 %v291, 1.442695
        %v293 = vpow.pop %v292
        %v294 = vadd.f32 %v293, 1.0
        %v295 = vrcp.pop %v294
        %v296 = vmul.f32 %v294, %v295
        %v297 = vsub.f32 1.0, %v296
        %v298 = vmul.f32 %v295, %v297
        %v299 = vadd.f32 %v295, %v298
        %vm300 = vweird.f32 %v294
        %vm301 = vweird.f32 %v295
        %vm302 = vmor %vm300, %vm301
        %v303 = vsel %vm302, %v295, %v299
        %v304 = vand.u32 2147483647, %v294
        %vm305 = vcmp.eq.f32.partialorder %v304, 8.507059e+37
        %v306 = vand.u32 %v294, 2147483648
        %v307 = vor.u32 1.1754944e-38, %v306
        %v308 = vsel %vm305, %v307, %v303
        %v309 = vmul.f32 1.0, %v308
        %v310 = vtanh.pop %v290
        %311 = vrot.lane.b32.xlu0 %v309, 96
        %v312 = vpop.permute.xlu0 %311
        %313 = vrot.lane.b32.xlu0 %v310, 64
        %v314 = vpop.permute.xlu0 %313
        %315 = vrot.lane.b32.xlu0 %v309, 32
        %v316 = vpop.permute.xlu0 %315
        %v317 = vmul.f32 %v312, %v259
        %v318 = vmul.f32 %v309, %v314
        %v319 = vadd.f32 %v317, %v318
        %v320 = vtanh.pop %v319
        %v321 = vmul.f32 %v316, %v320
        %p322 = scmp.lt.s32.totalorder %s257, 8
        %s323 = scalar_select %p322, 1, 0
        %v324 = vstv %s323
        %vm325 = vcmp.eq.s32.totalorder %v324, 1
        %v326 = vsel %vm325, %v321, %v258
        %v327 = vsel %vm325, %v319, %v259
        %s328 = scalar_lea.vmem [#allocation2], 8
        %v329 = vld [vmem:[%s328] sm:$0xff]
        %v330 = vpack.c.bf16 %v326, %v326
        %v332 = vsel %vm225, %v330, 0
        %334 = vmatpush.bf16.msra.mxu0 0
        %335 = vmatpush.bf16.msra.mxu0 0
        %336 = vmatpush.bf16.msra.mxu0 0
        %337 = vmatpush.bf16.msra.mxu0 0
        %338 = vmatpush.bf16.msra.mxu0 0
        %339 = vmatpush.bf16.msra.mxu0 0
        %340 = vmatpush.bf16.msra.mxu0 %v271
        %341 = vmatpush.bf16.msra.mxu0 %v270
        %342 = vmatmul.bf16.gmra.mxu0 %v332
        %v343 = vpop.f32.mrf.mxu0
        %v344 = vadd.f32 0.0, %v343
        %v345 = vpop.f32.mrf.mxu0
        %346 = vdwg.mxu0
        %v347 = vadd.f32 %v329, %v344
        %v348 = vxor.u32 %v347, 2147483648
        %v349 = vmul.f32 %v348, 1.442695
        %v350 = vpow.pop %v349
        %v351 = vadd.f32 %v350, 1.0
        %v352 = vrcp.pop %v351
        %v353 = vmul.f32 %v351, %v352
        %v354 = vsub.f32 1.0, %v353
        %v355 = vmul.f32 %v352, %v354
        %v356 = vadd.f32 %v352, %v355
        %vm357 = vweird.f32 %v351
        %vm358 = vweird.f32 %v352
        %vm359 = vmor %vm357, %vm358
        %v360 = vsel %vm359, %v352, %v356
        %v361 = vand.u32 2147483647, %v351
        %vm362 = vcmp.eq.f32.partialorder %v361, 8.507059e+37
        %v363 = vand.u32 %v351, 2147483648
        %v364 = vor.u32 1.1754944e-38, %v363
        %v365 = vsel %vm362, %v364, %v360
        %v366 = vmul.f32 1.0, %v365
        %v367 = vtanh.pop %v347
        %368 = vrot.lane.b32.xlu0 %v366, 96
        %v369 = vpop.permute.xlu0 %368
        %370 = vrot.lane.b32.xlu0 %v367, 64
        %v371 = vpop.permute.xlu0 %370
        %372 = vrot.lane.b32.xlu0 %v366, 32
        %v373 = vpop.permute.xlu0 %372
        %v374 = vmul.f32 %v369, %v327
        %v375 = vmul.f32 %v366, %v371
        %v376 = vadd.f32 %v374, %v375
        %v377 = vtanh.pop %v376
        %v378 = vmul.f32 %v373, %v377
        %s379 = sadd.s32 %s257, 1
        %p380 = scmp.lt.s32.totalorder %s379, 8
        %s381 = scalar_select %p380, 1, 0
        %v382 = vstv %s381
        %vm383 = vcmp.eq.s32.totalorder %v382, 1
        %v384 = vsel %vm383, %v378, %v326
        %v385 = vsel %vm383, %v376, %v327
        %s386 = scalar_lea.vmem [#allocation2], 16
        %v387 = vld [vmem:[%s386] sm:$0xff]
        %v388 = vpack.c.bf16 %v384, %v384
        %v390 = vsel %vm225, %v388, 0
        %392 = vmatpush.bf16.msra.mxu0 0
        %393 = vmatpush.bf16.msra.mxu0 0
        %394 = vmatpush.bf16.msra.mxu0 0
        %395 = vmatpush.bf16.msra.mxu0 0
        %396 = vmatpush.bf16.msra.mxu0 0
        %397 = vmatpush.bf16.msra.mxu0 0
        %398 = vmatpush.bf16.msra.mxu0 %v271
        %399 = vmatpush.bf16.msra.mxu0 %v270
        %400 = vmatmul.bf16.gmra.mxu0 %v390
        %v401 = vpop.f32.mrf.mxu0
        %v402 = vadd.f32 0.0, %v401
        %v403 = vpop.f32.mrf.mxu0
        %404 = vdwg.mxu0
        %v405 = vadd.f32 %v387, %v402
        %v406 = vxor.u32 %v405, 2147483648
        %v407 = vmul.f32 %v406, 1.442695
        %v408 = vpow.pop %v407
        %v409 = vadd.f32 %v408, 1.0
        %v410 = vrcp.pop %v409
        %v411 = vmul.f32 %v409, %v410
        %v412 = vsub.f32 1.0, %v411
        %v413 = vmul.f32 %v410, %v412
        %v414 = vadd.f32 %v410, %v413
        %vm415 = vweird.f32 %v409
        %vm416 = vweird.f32 %v410
        %vm417 = vmor %vm415, %vm416
        %v418 = vsel %vm417, %v410, %v414
        %v419 = vand.u32 2147483647, %v409
        %vm420 = vcmp.eq.f32.partialorder %v419, 8.507059e+37
        %v421 = vand.u32 %v409, 2147483648
        %v422 = vor.u32 1.1754944e-38, %v421
        %v423 = vsel %vm420, %v422, %v418
        %v424 = vmul.f32 1.0, %v423
        %v425 = vtanh.pop %v405
        %426 = vrot.lane.b32.xlu0 %v424, 96
        %v427 = vpop.permute.xlu0 %426
        %428 = vrot.lane.b32.xlu0 %v425, 64
        %v429 = vpop.permute.xlu0 %428
        %430 = vrot.lane.b32.xlu0 %v424, 32
        %v431 = vpop.permute.xlu0 %430
        %v432 = vmul.f32 %v427, %v385
        %v433 = vmul.f32 %v424, %v429
        %v434 = vadd.f32 %v432, %v433
        %v435 = vtanh.pop %v434
        %v436 = vmul.f32 %v431, %v435
        %s437 = sadd.s32 %s257, 2
        %p438 = scmp.lt.s32.totalorder %s437, 8
        %s439 = scalar_select %p438, 1, 0
        %v440 = vstv %s439
        %vm441 = vcmp.eq.s32.totalorder %v440, 1
        %v442 = vsel %vm441, %v436, %v384
        %v443 = vsel %vm441, %v434, %v385
        %444 = vst.msk [vmem:[#allocation3] sm:$0xff] %vm225, %v442
        %445 = vst.msk [vmem:[#allocation4] sm:$0xff] %vm225, %v443
        // Predicated region
        $region41: #{tpu_custom_call.1} parent=35 // pred_check
          %p446 = pneg %p118
        $region42: #{tpu_custom_call.1} parent=35 // pred_check_branch
          %448 = sbr.rel (%p446) target = $region44
        $region43: #{tpu_custom_call.1} parent=35 // pred_region
          %450 = vsyncadd [#allocation5], 0
          %s452 = sshll.u32 [#allocation4], 4
          %s453 = int_to_ptr.vmem [resolvable:$true] %s452
          %s454 = sshll.u32 %s4, 4
          %s455 = int_to_ptr.hbm [resolvable:$true] %s454
          %457 = dma.vmem_to_hbm [thread:$0]  %s453, 128, %s455, [#allocation5]
        $region44: #{tpu_custom_call.1} parent=35 // pred_fallthru
          _
        // Predicated region
        $region45: #{tpu_custom_call.1} parent=35 // pred_check
          %p458 = pneg %p118
        $region46: #{tpu_custom_call.1} parent=35 // pred_check_branch
          %460 = sbr.rel (%p458) target = $region48
        $region47: #{tpu_custom_call.1} parent=35 // pred_region
          %462 = dma.done [#allocation5], 128
        $region48: #{tpu_custom_call.1} parent=35 // pred_fallthru
          _
      $region36: #{tpu_custom_call.1} parent=5 // pred_fallthru
        _
      %p463 = scmp.le.s32.totalorder 2, %s11
      // Predicated region
      $region49: #{tpu_custom_call.1} parent=5 // pred_check
        %p464 = pneg %p463
      $region50: #{tpu_custom_call.1} parent=5 // pred_check_branch
        %466 = sbr.rel (%p464) target = $region52
      $region51: #{tpu_custom_call.1} parent=5 // pred_region
        %s467 = ssub.s32 %s11, 2
      $region52: #{tpu_custom_call.1} parent=5 // pred_fallthru
        _
    $region6: #{tpu_custom_call.1} parent=1 // loop_footer
      %s15 = sadd.s32 1, %s11
    $region7: #{tpu_custom_call.1} parent=1 // loop_footer_branch
      %10 = sbr.rel target = $region3
    $region8: #{tpu_custom_call.1} parent=1 // loop_exit
      _
    %468 = vsyncpa [#allocation5], 1
    %s469 = scalar_lea.sflag [#allocation5], 1
    %470 = vsyncpa %s469, 1

</llo_original>
